<compile_context>
chip_gen: v6e
topology: v6e:2x2x1
jax: 0.10.0
libtpu: 0.0.40
codegen_flags: <defaults>
</compile_context>

<pallas_src>
import jax
import jax.numpy as jnp
from jax.experimental import pallas as pl
from jax.experimental.pallas import tpu as pltpu

_LANE = 128      # lane width (last-dim tiling unit)
_SUBLANE = 8     # f32 sublane count (second-to-last-dim tiling unit)


def _round_up(x, m):
    return ((x + m - 1) // m) * m


def _cdiv(a, b):
    return (a + b - 1) // b


def _dense_relu_kernel(x_ref, w_ref, b_ref, o_ref):
    """Fused encoder (preproc folded into W'/b'): relu(x @ W' + b')."""
    x = x_ref[...].astype(w_ref.dtype)                 # f32 -> bf16 in-kernel
    h = jnp.dot(x, w_ref[...], preferred_element_type=jnp.float32)
    h = h + b_ref[...]                                  # f32 bias, broadcasts
    o_ref[...] = jnp.maximum(h, 0.0).astype(o_ref.dtype)


def prepare_params(mean, std, w, b, *, eps=1e-6, compute_dtype=jnp.bfloat16):
    """ONE-TIME parameter prep: fold (v - mean)/std into the dense layer.

    W' = diag(1/std) @ W ;  b' = b - (mean/std) @ W
    H is padded to a lane-dense multiple of 128; W' cast to bf16, b' kept f32.
    """
    D, H = w.shape
    std_safe = jnp.maximum(jnp.abs(std), eps)           # guard std <= 0
    inv_std = 1.0 / std_safe
    w_f = w * inv_std[:, None]
    b_f = b - (mean * inv_std) @ w

    H_pad = _round_up(H, _LANE)
    if H_pad != H:
        w_p = jnp.zeros((D, H_pad), compute_dtype).at[:, :H].set(
            w_f.astype(compute_dtype))
        b_p = jnp.zeros((1, H_pad), jnp.float32).at[:, :H].set(
            b_f.astype(jnp.float32).reshape(1, H))
    else:
        w_p = w_f.astype(compute_dtype)
        b_p = b_f.astype(jnp.float32).reshape(1, H)
    return w_p, b_p


def passthrough_preproc_forward(x, w_p, b_p, *, out_features=None,
                                tile_b=512, weight_slab_bytes=8 << 20,
                                out_dtype=jnp.bfloat16):
    """x: [B, D] f32 (unpadded); w_p: [D, H_pad] bf16; b_p: [1, H_pad] f32.

    Semantics: relu(((x - mean) / std) @ w + b) with the affine preproc already
    folded into w_p / b_p by prepare_params.  Returns [B, out_features or H_pad].
    """
    B, D = x.shape
    Dw, H_pad = w_p.shape
    assert D == Dw, "x feature dim must match prepared weight rows"

    # Batch tile: large and 16-aligned for big B; exact 8-aligned cover for small B.
    tb = min(tile_b, _round_up(B, 16))
    if tb > B:
        tb = _round_up(B, _SUBLANE)
    num_b = _cdiv(B, tb)

    # H tile: whole H_pad if the weight slab fits the budget, else 128-aligned slabs.
    itemsize_w = jnp.dtype(w_p.dtype).itemsize
    max_tn = max(_LANE, (weight_slab_bytes // (D * itemsize_w)) // _LANE * _LANE)
    tn = min(H_pad, max_tn)
    num_h = _cdiv(H_pad, tn)

    # Resident weights: single-buffer when fetched exactly once (constant index map).
    if num_h == 1:
        w_spec = pl.BlockSpec((D, tn), lambda j, i: (0, j),
                              pipeline_mode=pl.Buffered(1))
        b_spec = pl.BlockSpec((1, tn), lambda j, i: (0, j),
                              pipeline_mode=pl.Buffered(1))
        w_bufs = 1
    else:
        w_spec = pl.BlockSpec((D, tn), lambda j, i: (0, j))
        b_spec = pl.BlockSpec((1, tn), lambda j, i: (0, j))
        w_bufs = 2

    out_itemsize = jnp.dtype(out_dtype).itemsize
    vmem_est = (2 * tb * D * x.dtype.itemsize          # x, double-buffered f32
                + w_bufs * D * tn * itemsize_w          # W'
                + w_bufs * tn * 4                       # b'
                + 2 * tb * tn * out_itemsize            # out, double-buffered
                + tb * max(D, tn) * 4)                  # in-kernel temporaries
    vmem_limit = int(min(max(2 * vmem_est, 32 << 20), 48 << 20))

    cost = pl.CostEstimate(
        flops=2 * B * D * H_pad,
        transcendentals=0,
        bytes_accessed=(x.size * x.dtype.itemsize
                        + w_p.size * itemsize_w
                        + b_p.size * 4
                        + B * H_pad * out_itemsize),
    )

    out = pl.pallas_call(
        _dense_relu_kernel,
        out_shape=jax.ShapeDtypeStruct((B, H_pad), out_dtype),
        grid=(num_h, num_b),                     # H outer (weights reused), batch inner
        in_specs=[
            pl.BlockSpec((tb, D), lambda j, i: (i, 0)),   # unpadded f32 x, batch-tiled
            w_spec,
            b_spec,
        ],
        out_specs=pl.BlockSpec((tb, tn), lambda j, i: (i, j)),
        compiler_params=pltpu.CompilerParams(
            dimension_semantics=("parallel", "parallel"),
            vmem_limit_bytes=vmem_limit,
        ),
        cost_estimate=cost,
    )(x, w_p, b_p)

    if out_features is not None and out_features != H_pad:
        out = out[:, :out_features]
    return out


if __name__ == "__main__":
    key = jax.random.PRNGKey(0)
    k_x, k_w, k_b, k_m, k_s = jax.random.split(key, 5)

    B, D, H = 8, 32, 128   # batch, input features, encoder hidden size

    x = jax.random.normal(k_x, (B, D), dtype=jnp.float32)
    mean = jax.random.normal(k_m, (D,), dtype=jnp.float32) * 0.1
    std = jax.random.uniform(k_s, (D,), dtype=jnp.float32, minval=0.5, maxval=1.5)
    w = jax.random.normal(k_w, (D, H), dtype=jnp.float32) * (1.0 / (D ** 0.5))
    b = jax.random.normal(k_b, (H,), dtype=jnp.float32) * 0.01

    # One-time parameter prep (NOT in the per-call path).
    w_p, b_p = prepare_params(mean, std, w, b)
    w_p, b_p = jax.block_until_ready((w_p, b_p))

    fwd = jax.jit(passthrough_preproc_forward, static_argnames=("out_features",))
    out = fwd(x, w_p, b_p, out_features=H)
    out = jax.block_until_ready(out)
    assert out.shape == (B, H)
    assert out.dtype == jnp.bfloat16

    out_f32 = out.astype(jnp.float32)

    # Same-precision reference: bf16 operands, f32 accumulation, bf16 output.
    ref_same = jnp.maximum(
        jnp.dot(x.astype(jnp.bfloat16), w_p[:, :H],
                preferred_element_type=jnp.float32) + b_p[:, :H], 0.0
    ).astype(jnp.bfloat16).astype(jnp.float32)
    assert jnp.allclose(out_f32, ref_same, atol=2e-2, rtol=2e-2), \
        "mismatch vs same-precision reference"

    # Full-precision reference (original module semantics): loose tolerance
    # accounts for bf16 operand rounding.
    ref_fp = jnp.maximum(((x - mean) / jnp.maximum(jnp.abs(std), 1e-6)) @ w + b, 0.0)
    assert jnp.allclose(out_f32, ref_fp, atol=5e-2, rtol=5e-2), \
        "mismatch vs full-precision reference"

    print("KERNEL_OK")
</pallas_src>

<mosaic_0001>
module attributes {stable_mosaic.version = 11 : i64} {
  func.func @_dense_relu_kernel(%arg0: i32, %arg1: i32, %arg2: memref<8x32xf32, #tpu.memory_space<vmem>>, %arg3: memref<32x128xbf16, #tpu.memory_space<vmem>>, %arg4: memref<1x128xf32, #tpu.memory_space<vmem>>, %arg5: memref<8x128xbf16, #tpu.memory_space<vmem>>) attributes {dimension_semantics = [#tpu.dimension_semantics<parallel>, #tpu.dimension_semantics<parallel>], iteration_bounds = array<i64: 1, 1>, scalar_prefetch = 0 : i64, scratch_operands = 0 : i64, tpu.core_type = #tpu.core_type<tc>, window_params = [{transform_indices = @transform_0, window_bounds = array<i64: 8, 32>}, {pipeline_mode = #tpu.pipeline_mode<synchronous>, transform_indices = @transform_1, window_bounds = array<i64: 32, 128>}, {pipeline_mode = #tpu.pipeline_mode<synchronous>, transform_indices = @transform_2, window_bounds = array<i64: 1, 128>}, {transform_indices = @transform_3, window_bounds = array<i64: 8, 128>}]} {
    %c0 = arith.constant 0 : index
    %c0_0 = arith.constant 0 : index
    %0 = vector.load %arg2[%c0, %c0_0] : memref<8x32xf32, #tpu.memory_space<vmem>>, vector<8x32xf32>
    %1 = arith.truncf %0 : vector<8x32xf32> to vector<8x32xbf16>
    %c0_1 = arith.constant 0 : index
    %c0_2 = arith.constant 0 : index
    %2 = vector.load %arg3[%c0_1, %c0_2] : memref<32x128xbf16, #tpu.memory_space<vmem>>, vector<32x128xbf16>
    %cst = arith.constant dense<0.000000e+00> : vector<8x128xf32>
    %3 = tpu.matmul %1, %2, %cst {dimension_numbers = #tpu.dot_dimension_numbers<[1], [0], [0], [1], [0, 0, 1, 1], [], []>} : vector<8x32xbf16>, vector<32x128xbf16>, vector<8x128xf32> -> vector<8x128xf32>
    %c0_3 = arith.constant 0 : index
    %c0_4 = arith.constant 0 : index
    %4 = vector.load %arg4[%c0_3, %c0_4] : memref<1x128xf32, #tpu.memory_space<vmem>>, vector<1x128xf32>
    %5 = vector.broadcast %4 : vector<1x128xf32> to vector<8x128xf32>
    %6 = arith.addf %3, %5 : vector<8x128xf32>
    %cst_5 = arith.constant 0.000000e+00 : f32
    %7 = vector.broadcast %cst_5 : f32 to vector<8x128xf32>
    %8 = arith.maximumf %6, %7 : vector<8x128xf32>
    %9 = arith.truncf %8 : vector<8x128xf32> to vector<8x128xbf16>
    %c0_6 = arith.constant 0 : index
    %c0_7 = arith.constant 0 : index
    %10 = vector.load %arg5[%c0_6, %c0_7] : memref<8x128xbf16, #tpu.memory_space<vmem>>, vector<8x128xbf16>
    tpu.vector_store %arg5[%c0_6, %c0_7], %9 {strides = array<i32>} : memref<8x128xbf16, #tpu.memory_space<vmem>>, vector<8x128xbf16>,
    return
  }
  func.func @transform_0(%arg0: i32, %arg1: i32) -> (i32, i32) {
    %c0_i32 = arith.constant 0 : i32
    %c0_i32_0 = arith.constant 0 : i32
    return %arg1, %c0_i32 : i32, i32
  }
  func.func @transform_1(%arg0: i32, %arg1: i32) -> (i32, i32) {
    %c0_i32 = arith.constant 0 : i32
    %c0_i32_0 = arith.constant 0 : i32
    return %c0_i32, %arg0 : i32, i32
  }
  func.func @transform_2(%arg0: i32, %arg1: i32) -> (i32, i32) {
    %c0_i32 = arith.constant 0 : i32
    %c0_i32_0 = arith.constant 0 : i32
    return %c0_i32, %arg0 : i32, i32
  }
  func.func @transform_3(%arg0: i32, %arg1: i32) -> (i32, i32) {
    %c0_i32 = arith.constant 0 : i32
    return %arg1, %arg0 : i32, i32
  }
}

</mosaic_0001>

<llo_original>
// kernel: passthrough_preproc_forward.1
$region0: #{passthrough_preproc_forward.1}
  #allocation0 [shape = 'u32[]', space=smem, size = 0x4, offset = 0x4, fixed_abs, tag = 'smem constant byte address 0x4 - core index']
  #allocation1 [shape = 'u32[144,128]{1,0:T(1,128)}', space=vmem, size = 0x12000, scoped, tag = 'internal scratch']
  %s0 = inlined_call_operand.hbm [shape: f32[8,32], index: 0, kind: input, shape index: {}]
  %s1 = inlined_call_operand.hbm [shape: bf16[32,128], index: 1, kind: input, shape index: {}]
  %s2 = inlined_call_operand.vmem [shape: f32[1,128], index: 2, kind: input, shape index: {}]
  %s3 = inlined_call_operand.hbm [shape: bf16[8,128], index: 3, kind: output, shape index: {}]
  %s4 = sld [smem:[#allocation0]]
  $region30: #{passthrough_preproc_forward.1} parent=0
    _
  %s6 = ssub.s32 1, %s4
  %s7 = scalar_select 0, %s6, %s4
  $region1: #{passthrough_preproc_forward.1} parent=0
    #allocation2 [shape = 'u8[4096]{0}', space=vmem, size = 0x1000, scoped, tag = 'input window, operand 0, single buffered']
    #allocation3 [shape = 's32[1]{0}', space=sflag, size = 0x4, scoped, tag = 'scoped memory for passthrough_preproc_forward.1']
    #allocation4 [shape = 's32[1]{0}', space=sflag, size = 0x4, scoped, tag = 'scoped memory for passthrough_preproc_forward.1']
    #allocation5 [shape = 'u8[8192]{0}', space=vmem, size = 0x2000, scoped, tag = 'input window, operand 1, single buffered']
    #allocation6 [shape = 's32[1]{0}', space=sflag, size = 0x4, scoped, tag = 'scoped memory for passthrough_preproc_forward.1']
    #allocation7 [shape = 'u8[2048]{0}', space=vmem, size = 0x800, scoped, tag = 'output window, operand 0, single buffered']
    %8 = vsyncpa [#allocation3], 0
    %9 = vsyncpa [#allocation6], 0
    %10 = vsyncpa [#allocation4], 0
    // Predicated region
    $region2: #{passthrough_preproc_forward.1} parent=1 // pred_check
      _
    $region3: #{passthrough_preproc_forward.1} parent=1 // pred_check_branch
      %12 = sbr.rel (0) target = $region5
    $region4: #{passthrough_preproc_forward.1} parent=1 // pred_region
      %s14 = ssub.s32 128, 128
      %15 = vsyncadd [#allocation3], %s14
      %s17 = sshll.u32 [#allocation2], 4
      %s18 = int_to_ptr.vmem [resolvable:$true] %s17
      %20 = dma.hbm_to_vmem [thread:$0]  %s0, 128, %s18, [#allocation3]
    $region5: #{passthrough_preproc_forward.1} parent=1 // pred_fallthru
      _
    // Predicated region
    $region6: #{passthrough_preproc_forward.1} parent=1 // pred_check
      _
    $region7: #{passthrough_preproc_forward.1} parent=1 // pred_check_branch
      %22 = sbr.rel (0) target = $region9
    $region8: #{passthrough_preproc_forward.1} parent=1 // pred_region
      %s24 = ssub.s32 256, 256
      %25 = vsyncadd [#allocation6], %s24
      %s26 = sshll.u32 [#allocation5], 4
      %s27 = int_to_ptr.vmem [resolvable:$true] %s26
      %32 = dma.hbm_to_vmem [thread:$0]  %s1, 256, %s27, [#allocation6], 64, 64, 4
    $region9: #{passthrough_preproc_forward.1} parent=1 // pred_fallthru
      _
    // Predicated region
    $region10: #{passthrough_preproc_forward.1} parent=1 // pred_check
      _
    $region11: #{passthrough_preproc_forward.1} parent=1 // pred_check_branch
      %34 = sbr.rel (0) target = $region13
    $region12: #{passthrough_preproc_forward.1} parent=1 // pred_region
      _
    $region13: #{passthrough_preproc_forward.1} parent=1 // pred_fallthru
      _
    // Predicated region
    $region14: #{passthrough_preproc_forward.1} parent=1 // pred_check
      _
    $region15: #{passthrough_preproc_forward.1} parent=1 // pred_check_branch
      %36 = sbr.rel (0) target = $region17
    $region16: #{passthrough_preproc_forward.1} parent=1 // pred_region
      %37 = dma.done [#allocation3], 128
    $region17: #{passthrough_preproc_forward.1} parent=1 // pred_fallthru
      _
    // Predicated region
    $region18: #{passthrough_preproc_forward.1} parent=1 // pred_check
      _
    $region19: #{passthrough_preproc_forward.1} parent=1 // pred_check_branch
      %39 = sbr.rel (0) target = $region21
    $region20: #{passthrough_preproc_forward.1} parent=1 // pred_region
      %40 = dma.done [#allocation6], 256
    $region21: #{passthrough_preproc_forward.1} parent=1 // pred_fallthru
      _
    %v42 = vld [vmem:[#allocation2] sm:$0xff]
    %v43 = vpack.c.bf16 %v42, %v42
    %v44 = vld [vmem:[#allocation5] sm:$0xf]
    %v45 = vld [vmem:[#allocation5 + $0x4] sm:$0xf]
    %v46 = vld [vmem:[#allocation5 + $0x8] sm:$0xf]
    %v47 = vld [vmem:[#allocation5 + $0xc] sm:$0xf]
    %v48 = vld [vmem:[%s2] sm:$0x1]
    %v50 = vlaneseq
    %v51 = vshrl.u32 %v50, 7
    %v52 = vsub.s32 0, %v51
    %v53 = vrot.slane %v48, %v52
    %v59 = vunpack.c.l.b16 %v44
    %v60 = vunpack.c.l.b16 %v45
    %v61 = vunpack.c.l.b16 %v46
    %v62 = vunpack.c.l.b16 %v47
    %v63 = vpack.c.b16 %v60, %v59
    %v64 = vpack.c.b16 %v62, %v61
    %vm67 = vcmask 261120
    %v69 = vsel %vm67, %v43, 0
    %71 = vmatprep.subr.bf16.mxu0 0
    %72 = vmatpush1.bf16.msra.mxu0 0
    %73 = vmatprep.subr.bf16.mxu0 0
    %74 = vmatpush1.bf16.msra.mxu0 0
    %75 = vmatprep.subr.bf16.mxu0 0
    %76 = vmatpush1.bf16.msra.mxu0 0
    %77 = vmatprep.subr.bf16.mxu0 0
    %78 = vmatpush1.bf16.msra.mxu0 0
    %79 = vmatprep.subr.bf16.mxu0 0
    %80 = vmatpush1.bf16.msra.mxu0 0
    %81 = vmatprep.subr.bf16.mxu0 0
    %82 = vmatpush1.bf16.msra.mxu0 0
    %83 = vmatprep.subr.bf16.mxu0 0
    %84 = vmatpush1.bf16.msra.mxu0 %v64
    %85 = vmatprep.subr.bf16.mxu0 0
    %86 = vmatpush1.bf16.msra.mxu0 %v63
    %87 = vmatprep.subr.bf16.mxu0 0
    %88 = vmatpush2.bf16.msra.mxu0 0
    %89 = vmatprep.subr.bf16.mxu0 0
    %90 = vmatpush2.bf16.msra.mxu0 0
    %91 = vmatprep.subr.bf16.mxu0 0
    %92 = vmatpush2.bf16.msra.mxu0 0
    %93 = vmatprep.subr.bf16.mxu0 0
    %94 = vmatpush2.bf16.msra.mxu0 0
    %95 = vmatprep.subr.bf16.mxu0 0
    %96 = vmatpush2.bf16.msra.mxu0 0
    %97 = vmatprep.subr.bf16.mxu0 0
    %98 = vmatpush2.bf16.msra.mxu0 0
    %99 = vmatprep.subr.bf16.mxu0 0
    %100 = vmatpush2.bf16.msra.mxu0 0
    %101 = vmatprep.subr.bf16.mxu0 0
    %102 = vmatpush2.bf16.msra.mxu0 0
    %103 = vmatprep.mubr.bf16.mxu0 0
    %104 = vmatmul.mubr.bf16.gmra.mxu0 %v69
    %v105 = vpop.f32.mrf.mxu0
    %v106 = vadd.f32 %v53, %v105
    %v107 = vpop.f32.mrf.mxu0
    %v108 = vpop.f32.mrf.mxu0
    %v109 = vpop.f32.mrf.mxu0
    %110 = vdwg.mxu0
    %v111 = vmax.f32 %v106, 0.0
    %v112 = vpack.c.bf16 %v111, %v111
    %113 = vst [vmem:[#allocation7] sm:$0xf] %v112
    // Predicated region
    $region22: #{passthrough_preproc_forward.1} parent=1 // pred_check
      _
    $region23: #{passthrough_preproc_forward.1} parent=1 // pred_check_branch
      %115 = sbr.rel (0) target = $region25
    $region24: #{passthrough_preproc_forward.1} parent=1 // pred_region
      %s117 = ssub.s32 64, 64
      %118 = vsyncadd [#allocation4], %s117
      %s120 = sshll.u32 [#allocation7], 4
      %s121 = int_to_ptr.vmem [resolvable:$true] %s120
      %123 = dma.vmem_to_hbm [thread:$0]  %s121, 64, %s3, [#allocation4]
    $region25: #{passthrough_preproc_forward.1} parent=1 // pred_fallthru
      _
    // Predicated region
    $region26: #{passthrough_preproc_forward.1} parent=1 // pred_check
      _
    $region27: #{passthrough_preproc_forward.1} parent=1 // pred_check_branch
      %125 = sbr.rel (0) target = $region29
    $region28: #{passthrough_preproc_forward.1} parent=1 // pred_region
      %126 = dma.done [#allocation4], 64
    $region29: #{passthrough_preproc_forward.1} parent=1 // pred_fallthru
      _
    %127 = vsyncpa [#allocation3], 1
    %128 = vsyncpa [#allocation6], 1
    %129 = vsyncpa [#allocation4], 1

</llo_original>
